<compile_context>
chip_gen: v6e
topology: v6e:2x2x1
jax: 0.10.0
libtpu: 0.0.40
codegen_flags: <defaults>
</compile_context>

<pallas_src>
import jax
import jax.numpy as jnp
from jax.experimental import pallas as pl
from jax.experimental.pallas import tpu as pltpu

# Layer dims in PyTorch order: (out_features, in_features)
LAYER_DIMS = ((24, 9), (12, 24), (6, 12), (3, 6))

# Packed-parameter layout: each layer's rows start on a multiple-of-8 row so
# per-layer slices stay sublane-tile aligned.  cols [0:in] = weight (PyTorch
# [out, in] layout), col [in] = bias.
_ROW_OFF = (0, 24, 40, 48)
_N_ROWS = 56                     # 48 + 3 padded up to a multiple of 8
_N_COLS = 25                     # max(in_features) + 1 (bias column)


def _round_up(n, m):
    return -(-n // m) * m


def pack_params(weights, biases, dtype=jnp.float32):
    """weights[i]: [out, in] (PyTorch layout); biases[i]: [out]."""
    P = jnp.zeros((_N_ROWS, _N_COLS), dtype)
    for li, ((o, i), w, b) in enumerate(zip(LAYER_DIMS, weights, biases)):
        r = _ROW_OFF[li]
        P = P.at[r:r + o, 0:i].set(w.astype(dtype))
        P = P.at[r:r + o, i].set(b.astype(dtype))
    return P


def mlp_kernel(p_ref, x_ref, o_ref):
    # p_ref: [56, 25] packed weights+biases (resident in VMEM)
    # x_ref: [9, bt]  input tile, batch on the 128-wide lane axis
    # o_ref: [3, bt]  output tile, lane-dense store
    cdt = p_ref.dtype  # compute dtype on the MXU (f32 or bf16)

    def layer(h, li, relu):
        o, i = LAYER_DIMS[li]
        r = _ROW_OFF[li]
        w = p_ref[r:r + o, 0:i]                        # [out, in]
        b = p_ref[r:r + o, i:i + 1].astype(jnp.float32)  # [out, 1]
        h = jnp.dot(w, h.astype(cdt),
                    preferred_element_type=jnp.float32) + b
        return jnp.maximum(h, 0.0) if relu else h

    h = x_ref[...]
    h = layer(h, 0, True)
    h = layer(h, 1, True)
    h = layer(h, 2, True)
    h = layer(h, 3, False)
    o_ref[...] = h.astype(o_ref.dtype)


def mlp_forward_t(x_t, packed, *, batch_tile=32768, min_split_batch=1024):
    """Feature-major entry point. x_t: [9, B]; returns [3, B] float32."""
    f_in, B = x_t.shape
    assert f_in == 9
    assert batch_tile % 128 == 0 or batch_tile >= B, \
        "batch_tile must be a multiple of 128 (or >= B for the single-step path)"

    if B <= min(batch_tile, min_split_batch):
        # Tiny batch: one grid step, block == full array (no (8,128) constraint).
        bt = B
    else:
        # At least 2 grid steps (keeps both v7x TensorCores busy), tile is a
        # multiple of 128, capped at batch_tile (VMEM budget ~bt*400 B/step).
        bt = min(batch_tile, _round_up(pl.cdiv(B, 2), 128))

    grid = (pl.cdiv(B, bt),)   # ragged final block handled by Pallas masking

    out_t = pl.pallas_call(
        mlp_kernel,
        out_shape=jax.ShapeDtypeStruct((3, B), jnp.float32),
        grid_spec=pltpu.PrefetchScalarGridSpec(
            num_scalar_prefetch=0,
            grid=grid,
            in_specs=[
                # packed params: whole array, same block every step (resident)
                pl.BlockSpec((_N_ROWS, _N_COLS), lambda i: (0, 0)),
                # x^T tile: batch on lanes
                pl.BlockSpec((9, bt), lambda i: (0, i)),
            ],
            out_specs=pl.BlockSpec((3, bt), lambda i: (0, i)),
        ),
        compiler_params=pltpu.CompilerParams(
            dimension_semantics=("parallel",),
            vmem_limit_bytes=(48 * 1024 * 1024 if bt >= 16384 else None),
        ),
    )(packed, x_t)

    return out_t


def mlp_forward(x, packed, **kw):
    """PyTorch-layout entry point. x: [B, 9]; returns [B, 3] float32.

    Note: the transpose here is a real HBM pass; prefer mlp_forward_t if the
    surrounding graph can keep activations feature-major.
    """
    x_t = x.astype(packed.dtype).T            # [9, B]  batch -> lane axis
    return mlp_forward_t(x_t, packed, **kw).T  # [B, 3]


def init_params(key):
    """Deterministic init matching nn.Linear defaults (weights [out, in])."""
    weights, biases = [], []
    for (fan_out, fan_in) in LAYER_DIMS:
        key, kw, kb = jax.random.split(key, 3)
        bound = fan_in ** -0.5
        weights.append(jax.random.uniform(kw, (fan_out, fan_in), jnp.float32,
                                          -bound, bound))
        biases.append(jax.random.uniform(kb, (fan_out,), jnp.float32,
                                         -bound, bound))
    return weights, biases


def mlp_reference(x, weights, biases):
    h = x
    for idx, (w, b) in enumerate(zip(weights, biases)):
        h = h @ w.T + b
        if idx < len(weights) - 1:
            h = jnp.maximum(h, 0.0)
    return h


if __name__ == "__main__":
    key = jax.random.PRNGKey(0)
    key, kx1, kx2 = jax.random.split(key, 3)

    weights, biases = init_params(key)
    packed_f32 = pack_params(weights, biases, jnp.float32)
    packed_bf16 = pack_params(weights, biases, jnp.bfloat16)

    # Case 1: small batch -> single grid step (whole batch in one invocation).
    B1 = 16
    x1 = jax.random.normal(kx1, (B1, 9), jnp.float32)
    out1 = jax.block_until_ready(mlp_forward(x1, packed_f32))
    ref1 = mlp_reference(x1, weights, biases)
    assert out1.shape == (B1, 3)
    assert jnp.allclose(out1, ref1, atol=1e-4, rtol=1e-4), "mismatch (single-step)"

    # Case 2: forced small tile, B not a tile multiple -> exercises the tiled,
    # ragged-final-block, lane-dense grid path (no explicit padding).
    B2 = 300
    x2 = jax.random.normal(kx2, (B2, 9), jnp.float32)
    out2 = jax.block_until_ready(
        mlp_forward(x2, packed_f32, batch_tile=128, min_split_batch=128))
    ref2 = mlp_reference(x2, weights, biases)
    assert out2.shape == (B2, 3)
    assert jnp.allclose(out2, ref2, atol=1e-4, rtol=1e-4), "mismatch (tiled)"

    # Case 3: bf16 compute / f32 accumulate fast path (looser tolerance).
    out3 = jax.block_until_ready(
        mlp_forward(x2, packed_bf16, batch_tile=128, min_split_batch=128))
    assert out3.shape == (B2, 3)
    assert jnp.allclose(out3, ref2, atol=5e-2, rtol=5e-2), "mismatch (bf16)"

    print("KERNEL_OK")
</pallas_src>

<mosaic_0001>
module attributes {stable_mosaic.version = 11 : i64} {
  func.func @mlp_kernel(%arg0: i32, %arg1: memref<56x25xf32, #tpu.memory_space<vmem>>, %arg2: memref<9x16xf32, #tpu.memory_space<vmem>>, %arg3: memref<3x16xf32, #tpu.memory_space<vmem>>) attributes {dimension_semantics = [#tpu.dimension_semantics<parallel>], iteration_bounds = array<i64: 1>, scalar_prefetch = 0 : i64, scratch_operands = 0 : i64, tpu.core_type = #tpu.core_type<tc>, window_params = [{pipeline_mode = #tpu.pipeline_mode<synchronous>, transform_indices = @transform_0, window_bounds = array<i64: 56, 25>}, {transform_indices = @transform_1, window_bounds = array<i64: 9, 16>}, {transform_indices = @transform_2, window_bounds = array<i64: 3, 16>}]} {
    %c0 = arith.constant 0 : index
    %c0_0 = arith.constant 0 : index
    %0 = vector.load %arg2[%c0, %c0_0] : memref<9x16xf32, #tpu.memory_space<vmem>>, vector<9x16xf32>
    %c0_1 = arith.constant 0 : index
    %c0_2 = arith.constant 0 : index
    %1 = vector.load %arg1[%c0_1, %c0_2] : memref<56x25xf32, #tpu.memory_space<vmem>>, vector<24x9xf32>
    %c0_3 = arith.constant 0 : index
    %c9 = arith.constant 9 : index
    %2 = vector.load %arg1[%c0_3, %c9] : memref<56x25xf32, #tpu.memory_space<vmem>>, vector<24x1xf32>
    %cst = arith.constant dense<0.000000e+00> : vector<24x16xf32>
    %3 = tpu.matmul %1, %0, %cst {dimension_numbers = #tpu.dot_dimension_numbers<[1], [0], [0], [1], [0, 0, 1, 1], [], []>} : vector<24x9xf32>, vector<9x16xf32>, vector<24x16xf32> -> vector<24x16xf32>
    %4 = vector.broadcast %2 : vector<24x1xf32> to vector<24x16xf32>
    %5 = arith.addf %3, %4 : vector<24x16xf32>
    %cst_4 = arith.constant 0.000000e+00 : f32
    %6 = vector.broadcast %cst_4 : f32 to vector<24x16xf32>
    %7 = arith.maximumf %5, %6 : vector<24x16xf32>
    %c24 = arith.constant 24 : index
    %c0_5 = arith.constant 0 : index
    %8 = vector.load %arg1[%c24, %c0_5] : memref<56x25xf32, #tpu.memory_space<vmem>>, vector<12x24xf32>
    %c24_6 = arith.constant 24 : index
    %c24_7 = arith.constant 24 : index
    %9 = vector.load %arg1[%c24_6, %c24_7] : memref<56x25xf32, #tpu.memory_space<vmem>>, vector<12x1xf32>
    %cst_8 = arith.constant dense<0.000000e+00> : vector<12x16xf32>
    %10 = tpu.matmul %8, %7, %cst_8 {dimension_numbers = #tpu.dot_dimension_numbers<[1], [0], [0], [1], [0, 0, 1, 1], [], []>} : vector<12x24xf32>, vector<24x16xf32>, vector<12x16xf32> -> vector<12x16xf32>
    %11 = vector.broadcast %9 : vector<12x1xf32> to vector<12x16xf32>
    %12 = arith.addf %10, %11 : vector<12x16xf32>
    %cst_9 = arith.constant 0.000000e+00 : f32
    %13 = vector.broadcast %cst_9 : f32 to vector<12x16xf32>
    %14 = arith.maximumf %12, %13 : vector<12x16xf32>
    %c40 = arith.constant 40 : index
    %c0_10 = arith.constant 0 : index
    %15 = vector.load %arg1[%c40, %c0_10] : memref<56x25xf32, #tpu.memory_space<vmem>>, vector<6x12xf32>
    %c40_11 = arith.constant 40 : index
    %c12 = arith.constant 12 : index
    %16 = vector.load %arg1[%c40_11, %c12] : memref<56x25xf32, #tpu.memory_space<vmem>>, vector<6x1xf32>
    %cst_12 = arith.constant dense<0.000000e+00> : vector<6x16xf32>
    %17 = tpu.matmul %15, %14, %cst_12 {dimension_numbers = #tpu.dot_dimension_numbers<[1], [0], [0], [1], [0, 0, 1, 1], [], []>} : vector<6x12xf32>, vector<12x16xf32>, vector<6x16xf32> -> vector<6x16xf32>
    %18 = vector.broadcast %16 : vector<6x1xf32> to vector<6x16xf32>
    %19 = arith.addf %17, %18 : vector<6x16xf32>
    %cst_13 = arith.constant 0.000000e+00 : f32
    %20 = vector.broadcast %cst_13 : f32 to vector<6x16xf32>
    %21 = arith.maximumf %19, %20 : vector<6x16xf32>
    %c48 = arith.constant 48 : index
    %c0_14 = arith.constant 0 : index
    %22 = vector.load %arg1[%c48, %c0_14] : memref<56x25xf32, #tpu.memory_space<vmem>>, vector<3x6xf32>
    %c48_15 = arith.constant 48 : index
    %c6 = arith.constant 6 : index
    %23 = vector.load %arg1[%c48_15, %c6] : memref<56x25xf32, #tpu.memory_space<vmem>>, vector<3x1xf32>
    %cst_16 = arith.constant dense<0.000000e+00> : vector<3x16xf32>
    %24 = tpu.matmul %22, %21, %cst_16 {dimension_numbers = #tpu.dot_dimension_numbers<[1], [0], [0], [1], [0, 0, 1, 1], [], []>} : vector<3x6xf32>, vector<6x16xf32>, vector<3x16xf32> -> vector<3x16xf32>
    %25 = vector.broadcast %23 : vector<3x1xf32> to vector<3x16xf32>
    %26 = arith.addf %24, %25 : vector<3x16xf32>
    %c0_17 = arith.constant 0 : index
    %c0_18 = arith.constant 0 : index
    %27 = vector.load %arg3[%c0_17, %c0_18] : memref<3x16xf32, #tpu.memory_space<vmem>>, vector<3x16xf32>
    tpu.vector_store %arg3[%c0_17, %c0_18], %26 {strides = array<i32>} : memref<3x16xf32, #tpu.memory_space<vmem>>, vector<3x16xf32>,
    return
  }
  func.func @transform_0(%arg0: i32) -> (i32, i32) {
    %c0_i32 = arith.constant 0 : i32
    %c0_i32_0 = arith.constant 0 : i32
    %c0_i32_1 = arith.constant 0 : i32
    return %c0_i32, %c0_i32_0 : i32, i32
  }
  func.func @transform_1(%arg0: i32) -> (i32, i32) {
    %c0_i32 = arith.constant 0 : i32
    %c0_i32_0 = arith.constant 0 : i32
    return %c0_i32, %arg0 : i32, i32
  }
  func.func @transform_2(%arg0: i32) -> (i32, i32) {
    %c0_i32 = arith.constant 0 : i32
    %c0_i32_0 = arith.constant 0 : i32
    return %c0_i32, %arg0 : i32, i32
  }
}

</mosaic_0001>

<llo_original>
// kernel: tpu_custom_call.1
$region0: #{tpu_custom_call.1}
  #allocation0 [shape = 'u32[]', space=smem, size = 0x4, offset = 0x4, fixed_abs, tag = 'smem constant byte address 0x4 - core index']
  #allocation1 [shape = 'u32[144,128]{1,0:T(1,128)}', space=vmem, size = 0x12000, scoped, tag = 'internal scratch']
  %s0 = inlined_call_operand.vmem [shape: f32[56,25], index: 0, kind: input, shape index: {}]
  %s1 = inlined_call_operand.vmem [shape: f32[9,16], index: 1, kind: input, shape index: {}]
  %s2 = inlined_call_operand.hbm [shape: f32[3,16], index: 2, kind: output, shape index: {}]
  %s3 = sld [smem:[#allocation0]]
  $region18: #{tpu_custom_call.1} parent=0
    _
  %s5 = ssub.s32 1, %s3
  %s6 = scalar_select 0, %s5, %s3
  $region1: #{tpu_custom_call.1} parent=0
    #allocation2 [shape = 'u8[2048]{0}', space=vmem, size = 0x800, scoped, tag = 'output window, operand 0, single buffered']
    #allocation3 [shape = 's32[1]{0}', space=sflag, size = 0x4, scoped, tag = 'scoped memory for tpu_custom_call.1']
    %7 = vsyncpa [#allocation3], 0
    // Predicated region
    $region2: #{tpu_custom_call.1} parent=1 // pred_check
      _
    $region3: #{tpu_custom_call.1} parent=1 // pred_check_branch
      %9 = sbr.rel (0) target = $region5
    $region4: #{tpu_custom_call.1} parent=1 // pred_region
      _
    $region5: #{tpu_custom_call.1} parent=1 // pred_fallthru
      _
    // Predicated region
    $region6: #{tpu_custom_call.1} parent=1 // pred_check
      _
    $region7: #{tpu_custom_call.1} parent=1 // pred_check_branch
      %11 = sbr.rel (0) target = $region9
    $region8: #{tpu_custom_call.1} parent=1 // pred_region
      _
    $region9: #{tpu_custom_call.1} parent=1 // pred_fallthru
      _
    %v12 = vld [vmem:[%s1] sm:$0xff]
    %v13 = vld [vmem:[%s1 + $0x8] sm:$0x1]
    %v14 = vld [vmem:[%s0] sm:$0xff]
    %v15 = vld [vmem:[%s0 + $0x8] sm:$0xff]
    %v16 = vld [vmem:[%s0 + $0x10] sm:$0xff]
    %18 = vset.pattern.permute.xlu0 9
    %19 = vperm.xlu0 %18, %v14
    %v20 = vpop.permute.xlu0 %19
    %23 = vset.pattern.permute.xlu0 9
    %24 = vperm.xlu0 %23, %v15
    %v25 = vpop.permute.xlu0 %24
    %28 = vset.pattern.permute.xlu0 9
    %29 = vperm.xlu0 %28, %v16
    %v30 = vpop.permute.xlu0 %29
    %vm32 = vcmask 72704
    %v33 = vsel %vm32, %v14, 0
    %v35 = vsel %vm32, %v15, 0
    %v37 = vsel %vm32, %v16, 0
    %vm39 = vcmask 1040384
    %v41 = vsel %vm39, %v13, 0
    %43 = vmatprep.subr.mxu0 0.0
    %44 = vmatpush1.msra.mxu0 0.0
    %45 = vmatprep.subr.mxu0 0.0
    %46 = vmatpush1.msra.mxu0 0.0
    %47 = vmatprep.subr.mxu0 0.0
    %48 = vmatpush1.msra.mxu0 0.0
    %49 = vmatprep.subr.mxu0 0.0
    %50 = vmatpush1.msra.mxu0 0.0
    %51 = vmatprep.subr.mxu0 0.0
    %52 = vmatpush1.msra.mxu0 0.0
    %53 = vmatprep.subr.mxu0 0.0
    %54 = vmatpush1.msra.mxu0 0.0
    %55 = vmatprep.subr.mxu0 0.0
    %56 = vmatpush1.msra.mxu0 0.0
    %57 = vmatprep.subr.mxu0 0.0
    %58 = vmatpush1.msra.mxu0 0.0
    %59 = vmatprep.subr.mxu0 0.0
    %60 = vmatpush1.msra.mxu0 0.0
    %61 = vmatprep.subr.mxu0 0.0
    %62 = vmatpush1.msra.mxu0 0.0
    %63 = vmatprep.subr.mxu0 0.0
    %64 = vmatpush1.msra.mxu0 0.0
    %65 = vmatprep.subr.mxu0 0.0
    %66 = vmatpush1.msra.mxu0 0.0
    %67 = vmatprep.subr.mxu0 0.0
    %68 = vmatpush1.msra.mxu0 0.0
    %69 = vmatprep.subr.mxu0 0.0
    %70 = vmatpush1.msra.mxu0 0.0
    %71 = vmatprep.subr.mxu0 0.0
    %72 = vmatpush1.msra.mxu0 %v41
    %73 = vmatprep.subr.mxu0 0.0
    %74 = vmatpush1.msra.mxu0 %v12
    %75 = vmatprep.subr.mxu0 0.0
    %76 = vmatpush2.msra.mxu0 0.0
    %77 = vmatprep.subr.mxu0 0.0
    %78 = vmatpush2.msra.mxu0 0.0
    %79 = vmatprep.subr.mxu0 0.0
    %80 = vmatpush2.msra.mxu0 0.0
    %81 = vmatprep.subr.mxu0 0.0
    %82 = vmatpush2.msra.mxu0 0.0
    %83 = vmatprep.subr.mxu0 0.0
    %84 = vmatpush2.msra.mxu0 0.0
    %85 = vmatprep.subr.mxu0 0.0
    %86 = vmatpush2.msra.mxu0 0.0
    %87 = vmatprep.subr.mxu0 0.0
    %88 = vmatpush2.msra.mxu0 0.0
    %89 = vmatprep.subr.mxu0 0.0
    %90 = vmatpush2.msra.mxu0 0.0
    %91 = vmatprep.subr.mxu0 0.0
    %92 = vmatpush2.msra.mxu0 0.0
    %93 = vmatprep.subr.mxu0 0.0
    %94 = vmatpush2.msra.mxu0 0.0
    %95 = vmatprep.subr.mxu0 0.0
    %96 = vmatpush2.msra.mxu0 0.0
    %97 = vmatprep.subr.mxu0 0.0
    %98 = vmatpush2.msra.mxu0 0.0
    %99 = vmatprep.subr.mxu0 0.0
    %100 = vmatpush2.msra.mxu0 0.0
    %101 = vmatprep.subr.mxu0 0.0
    %102 = vmatpush2.msra.mxu0 0.0
    %103 = vmatprep.subr.mxu0 0.0
    %104 = vmatpush2.msra.mxu0 0.0
    %105 = vmatprep.subr.mxu0 0.0
    %106 = vmatpush2.msra.mxu0 0.0
    %107 = vmatprep.mubr.f32.mxu0 0.0
    %108 = vmatmul.mubr.f32.gmra.mxu0 %v33
    %v109 = vpop.f32.mrf.mxu0
    %v110 = vadd.f32 %v20, %v109
    %v111 = vpop.f32.mrf.mxu0
    %112 = vmatprep.mubr.f32.mxu0 0.0
    %113 = vmatmul.mubr.f32.gmra.mxu0 %v35
    %v114 = vpop.f32.mrf.mxu0
    %v115 = vadd.f32 %v25, %v114
    %v116 = vpop.f32.mrf.mxu0
    %117 = vmatprep.mubr.f32.mxu0 0.0
    %118 = vmatmul.mubr.f32.gmra.mxu0 %v37
    %v119 = vpop.f32.mrf.mxu0
    %v120 = vadd.f32 %v30, %v119
    %v121 = vpop.f32.mrf.mxu0
    %122 = vdwg.mxu0
    %v123 = vmax.f32 %v110, 0.0
    %v124 = vmax.f32 %v115, 0.0
    %v125 = vmax.f32 %v120, 0.0
    %v126 = vld [vmem:[%s0 + $0x18] sm:$0xff]
    %v127 = vld [vmem:[%s0 + $0x20] sm:$0xf]
    %129 = vset.pattern.permute.xlu0 24
    %130 = vperm.xlu0 %129, %v126
    %v131 = vpop.permute.xlu0 %130
    %134 = vset.pattern.permute.xlu0 24
    %135 = vperm.xlu0 %134, %v127
    %v136 = vpop.permute.xlu0 %135
    %vm138 = vcmask 195584
    %v139 = vsel %vm138, %v126, 0
    %v141 = vsel %vm138, %v127, 0
    %143 = vmatprep.subr.mxu0 0.0
    %144 = vmatpush1.msra.mxu0 0.0
    %145 = vmatprep.subr.mxu0 0.0
    %146 = vmatpush1.msra.mxu0 0.0
    %147 = vmatprep.subr.mxu0 0.0
    %148 = vmatpush1.msra.mxu0 0.0
    %149 = vmatprep.subr.mxu0 0.0
    %150 = vmatpush1.msra.mxu0 0.0
    %151 = vmatprep.subr.mxu0 0.0
    %152 = vmatpush1.msra.mxu0 0.0
    %153 = vmatprep.subr.mxu0 0.0
    %154 = vmatpush1.msra.mxu0 0.0
    %155 = vmatprep.subr.mxu0 0.0
    %156 = vmatpush1.msra.mxu0 0.0
    %157 = vmatprep.subr.mxu0 0.0
    %158 = vmatpush1.msra.mxu0 0.0
    %159 = vmatprep.subr.mxu0 0.0
    %160 = vmatpush1.msra.mxu0 0.0
    %161 = vmatprep.subr.mxu0 0.0
    %162 = vmatpush1.msra.mxu0 0.0
    %163 = vmatprep.subr.mxu0 0.0
    %164 = vmatpush1.msra.mxu0 0.0
    %165 = vmatprep.subr.mxu0 0.0
    %166 = vmatpush1.msra.mxu0 0.0
    %167 = vmatprep.subr.mxu0 0.0
    %168 = vmatpush1.msra.mxu0 0.0
    %169 = vmatprep.subr.mxu0 0.0
    %170 = vmatpush1.msra.mxu0 %v125
    %171 = vmatprep.subr.mxu0 0.0
    %172 = vmatpush1.msra.mxu0 %v124
    %173 = vmatprep.subr.mxu0 0.0
    %174 = vmatpush1.msra.mxu0 %v123
    %175 = vmatprep.subr.mxu0 0.0
    %176 = vmatpush2.msra.mxu0 0.0
    %177 = vmatprep.subr.mxu0 0.0
    %178 = vmatpush2.msra.mxu0 0.0
    %179 = vmatprep.subr.mxu0 0.0
    %180 = vmatpush2.msra.mxu0 0.0
    %181 = vmatprep.subr.mxu0 0.0
    %182 = vmatpush2.msra.mxu0 0.0
    %183 = vmatprep.subr.mxu0 0.0
    %184 = vmatpush2.msra.mxu0 0.0
    %185 = vmatprep.subr.mxu0 0.0
    %186 = vmatpush2.msra.mxu0 0.0
    %187 = vmatprep.subr.mxu0 0.0
    %188 = vmatpush2.msra.mxu0 0.0
    %189 = vmatprep.subr.mxu0 0.0
    %190 = vmatpush2.msra.mxu0 0.0
    %191 = vmatprep.subr.mxu0 0.0
    %192 = vmatpush2.msra.mxu0 0.0
    %193 = vmatprep.subr.mxu0 0.0
    %194 = vmatpush2.msra.mxu0 0.0
    %195 = vmatprep.subr.mxu0 0.0
    %196 = vmatpush2.msra.mxu0 0.0
    %197 = vmatprep.subr.mxu0 0.0
    %198 = vmatpush2.msra.mxu0 0.0
    %199 = vmatprep.subr.mxu0 0.0
    %200 = vmatpush2.msra.mxu0 0.0
    %201 = vmatprep.subr.mxu0 0.0
    %202 = vmatpush2.msra.mxu0 0.0
    %203 = vmatprep.subr.mxu0 0.0
    %204 = vmatpush2.msra.mxu0 0.0
    %205 = vmatprep.subr.mxu0 0.0
    %206 = vmatpush2.msra.mxu0 0.0
    %207 = vmatprep.mubr.f32.mxu0 0.0
    %208 = vmatmul.mubr.f32.gmra.mxu0 %v139
    %v209 = vpop.f32.mrf.mxu0
    %v210 = vadd.f32 %v131, %v209
    %v211 = vpop.f32.mrf.mxu0
    %212 = vmatprep.mubr.f32.mxu0 0.0
    %213 = vmatmul.mubr.f32.gmra.mxu0 %v141
    %v214 = vpop.f32.mrf.mxu0
    %v215 = vadd.f32 %v136, %v214
    %v216 = vpop.f32.mrf.mxu0
    %217 = vdwg.mxu0
    %v218 = vmax.f32 %v210, 0.0
    %v219 = vmax.f32 %v215, 0.0
    %v220 = vld [vmem:[%s0 + $0x28] sm:$0x3f]
    %222 = vset.pattern.permute.xlu0 12
    %223 = vperm.xlu0 %222, %v220
    %v224 = vpop.permute.xlu0 %223
    %vm226 = vcmask 97280
    %v227 = vsel %vm226, %v220, 0
    %vm229 = vcmask 1043456
    %v231 = vsel %vm229, %v219, 0
    %233 = vmatprep.subr.mxu0 0.0
    %234 = vmatpush1.msra.mxu0 0.0
    %235 = vmatprep.subr.mxu0 0.0
    %236 = vmatpush1.msra.mxu0 0.0
    %237 = vmatprep.subr.mxu0 0.0
    %238 = vmatpush1.msra.mxu0 0.0
    %239 = vmatprep.subr.mxu0 0.0
    %240 = vmatpush1.msra.mxu0 0.0
    %241 = vmatprep.subr.mxu0 0.0
    %242 = vmatpush1.msra.mxu0 0.0
    %243 = vmatprep.subr.mxu0 0.0
    %244 = vmatpush1.msra.mxu0 0.0
    %245 = vmatprep.subr.mxu0 0.0
    %246 = vmatpush1.msra.mxu0 0.0
    %247 = vmatprep.subr.mxu0 0.0
    %248 = vmatpush1.msra.mxu0 0.0
    %249 = vmatprep.subr.mxu0 0.0
    %250 = vmatpush1.msra.mxu0 0.0
    %251 = vmatprep.subr.mxu0 0.0
    %252 = vmatpush1.msra.mxu0 0.0
    %253 = vmatprep.subr.mxu0 0.0
    %254 = vmatpush1.msra.mxu0 0.0
    %255 = vmatprep.subr.mxu0 0.0
    %256 = vmatpush1.msra.mxu0 0.0
    %257 = vmatprep.subr.mxu0 0.0
    %258 = vmatpush1.msra.mxu0 0.0
    %259 = vmatprep.subr.mxu0 0.0
    %260 = vmatpush1.msra.mxu0 0.0
    %261 = vmatprep.subr.mxu0 0.0
    %262 = vmatpush1.msra.mxu0 %v231
    %263 = vmatprep.subr.mxu0 0.0
    %264 = vmatpush1.msra.mxu0 %v218
    %265 = vmatprep.subr.mxu0 0.0
    %266 = vmatpush2.msra.mxu0 0.0
    %267 = vmatprep.subr.mxu0 0.0
    %268 = vmatpush2.msra.mxu0 0.0
    %269 = vmatprep.subr.mxu0 0.0
    %270 = vmatpush2.msra.mxu0 0.0
    %271 = vmatprep.subr.mxu0 0.0
    %272 = vmatpush2.msra.mxu0 0.0
    %273 = vmatprep.subr.mxu0 0.0
    %274 = vmatpush2.msra.mxu0 0.0
    %275 = vmatprep.subr.mxu0 0.0
    %276 = vmatpush2.msra.mxu0 0.0
    %277 = vmatprep.subr.mxu0 0.0
    %278 = vmatpush2.msra.mxu0 0.0
    %279 = vmatprep.subr.mxu0 0.0
    %280 = vmatpush2.msra.mxu0 0.0
    %281 = vmatprep.subr.mxu0 0.0
    %282 = vmatpush2.msra.mxu0 0.0
    %283 = vmatprep.subr.mxu0 0.0
    %284 = vmatpush2.msra.mxu0 0.0
    %285 = vmatprep.subr.mxu0 0.0
    %286 = vmatpush2.msra.mxu0 0.0
    %287 = vmatprep.subr.mxu0 0.0
    %288 = vmatpush2.msra.mxu0 0.0
    %289 = vmatprep.subr.mxu0 0.0
    %290 = vmatpush2.msra.mxu0 0.0
    %291 = vmatprep.subr.mxu0 0.0
    %292 = vmatpush2.msra.mxu0 0.0
    %293 = vmatprep.subr.mxu0 0.0
    %294 = vmatpush2.msra.mxu0 0.0
    %295 = vmatprep.subr.mxu0 0.0
    %296 = vmatpush2.msra.mxu0 0.0
    %297 = vmatprep.mubr.f32.mxu0 0.0
    %298 = vmatmul.mubr.f32.gmra.mxu0 %v227
    %v299 = vpop.f32.mrf.mxu0
    %v300 = vadd.f32 %v224, %v299
    %v301 = vpop.f32.mrf.mxu0
    %302 = vdwg.mxu0
    %v303 = vmax.f32 %v300, 0.0
    %v304 = vld [vmem:[%s0 + $0x30] sm:$0x7]
    %306 = vset.pattern.permute.xlu0 6
    %307 = vperm.xlu0 %306, %v304
    %v308 = vpop.permute.xlu0 %307
    %vm310 = vcmask 48128
    %v311 = vsel %vm310, %v304, 0
    %vm313 = vcmask 1045504
    %v315 = vsel %vm313, %v303, 0
    %317 = vmatprep.subr.mxu0 0.0
    %318 = vmatpush1.msra.mxu0 0.0
    %319 = vmatprep.subr.mxu0 0.0
    %320 = vmatpush1.msra.mxu0 0.0
    %321 = vmatprep.subr.mxu0 0.0
    %322 = vmatpush1.msra.mxu0 0.0
    %323 = vmatprep.subr.mxu0 0.0
    %324 = vmatpush1.msra.mxu0 0.0
    %325 = vmatprep.subr.mxu0 0.0
    %326 = vmatpush1.msra.mxu0 0.0
    %327 = vmatprep.subr.mxu0 0.0
    %328 = vmatpush1.msra.mxu0 0.0
    %329 = vmatprep.subr.mxu0 0.0
    %330 = vmatpush1.msra.mxu0 0.0
    %331 = vmatprep.subr.mxu0 0.0
    %332 = vmatpush1.msra.mxu0 0.0
    %333 = vmatprep.subr.mxu0 0.0
    %334 = vmatpush1.msra.mxu0 0.0
    %335 = vmatprep.subr.mxu0 0.0
    %336 = vmatpush1.msra.mxu0 0.0
    %337 = vmatprep.subr.mxu0 0.0
    %338 = vmatpush1.msra.mxu0 0.0
    %339 = vmatprep.subr.mxu0 0.0
    %340 = vmatpush1.msra.mxu0 0.0
    %341 = vmatprep.subr.mxu0 0.0
    %342 = vmatpush1.msra.mxu0 0.0
    %343 = vmatprep.subr.mxu0 0.0
    %344 = vmatpush1.msra.mxu0 0.0
    %345 = vmatprep.subr.mxu0 0.0
    %346 = vmatpush1.msra.mxu0 0.0
    %347 = vmatprep.subr.mxu0 0.0
    %348 = vmatpush1.msra.mxu0 %v315
    %349 = vmatprep.subr.mxu0 0.0
    %350 = vmatpush2.msra.mxu0 0.0
    %351 = vmatprep.subr.mxu0 0.0
    %352 = vmatpush2.msra.mxu0 0.0
    %353 = vmatprep.subr.mxu0 0.0
    %354 = vmatpush2.msra.mxu0 0.0
    %355 = vmatprep.subr.mxu0 0.0
    %356 = vmatpush2.msra.mxu0 0.0
    %357 = vmatprep.subr.mxu0 0.0
    %358 = vmatpush2.msra.mxu0 0.0
    %359 = vmatprep.subr.mxu0 0.0
    %360 = vmatpush2.msra.mxu0 0.0
    %361 = vmatprep.subr.mxu0 0.0
    %362 = vmatpush2.msra.mxu0 0.0
    %363 = vmatprep.subr.mxu0 0.0
    %364 = vmatpush2.msra.mxu0 0.0
    %365 = vmatprep.subr.mxu0 0.0
    %366 = vmatpush2.msra.mxu0 0.0
    %367 = vmatprep.subr.mxu0 0.0
    %368 = vmatpush2.msra.mxu0 0.0
    %369 = vmatprep.subr.mxu0 0.0
    %370 = vmatpush2.msra.mxu0 0.0
    %371 = vmatprep.subr.mxu0 0.0
    %372 = vmatpush2.msra.mxu0 0.0
    %373 = vmatprep.subr.mxu0 0.0
    %374 = vmatpush2.msra.mxu0 0.0
    %375 = vmatprep.subr.mxu0 0.0
    %376 = vmatpush2.msra.mxu0 0.0
    %377 = vmatprep.subr.mxu0 0.0
    %378 = vmatpush2.msra.mxu0 0.0
    %379 = vmatprep.subr.mxu0 0.0
    %380 = vmatpush2.msra.mxu0 0.0
    %381 = vmatprep.mubr.f32.mxu0 0.0
    %382 = vmatmul.mubr.f32.gmra.mxu0 %v311
    %v383 = vpop.f32.mrf.mxu0
    %v384 = vadd.f32 %v308, %v383
    %v385 = vpop.f32.mrf.mxu0
    %386 = vdwg.mxu0
    %vm387 = vcmask 124928
    %388 = vst.msk [vmem:[#allocation2] sm:$0x7] %vm387, %v384
    // Predicated region
    $region10: #{tpu_custom_call.1} parent=1 // pred_check
      _
    $region11: #{tpu_custom_call.1} parent=1 // pred_check_branch
      %390 = sbr.rel (0) target = $region13
    $region12: #{tpu_custom_call.1} parent=1 // pred_region
      %s392 = ssub.s32 64, 64
      %393 = vsyncadd [#allocation3], %s392
      %s395 = sshll.u32 [#allocation2], 4
      %s396 = int_to_ptr.vmem [resolvable:$true] %s395
      %398 = dma.vmem_to_hbm [thread:$0]  %s396, 64, %s2, [#allocation3]
    $region13: #{tpu_custom_call.1} parent=1 // pred_fallthru
      _
    // Predicated region
    $region14: #{tpu_custom_call.1} parent=1 // pred_check
      _
    $region15: #{tpu_custom_call.1} parent=1 // pred_check_branch
      %400 = sbr.rel (0) target = $region17
    $region16: #{tpu_custom_call.1} parent=1 // pred_region
      %401 = dma.done [#allocation3], 64
    $region17: #{tpu_custom_call.1} parent=1 // pred_fallthru
      _
    %402 = vsyncpa [#allocation3], 1

</llo_original>
